<compile_context>
chip_gen: v5e
topology: v5e:2x2
jax: 0.10.0
libtpu: 0.0.40
codegen_flags: <defaults>
</compile_context>

<pallas_src>
import math

import jax
import jax.numpy as jnp
from jax.experimental import pallas as pl
from jax.experimental.pallas import tpu as pltpu

BN_EPS = 1e-5  # PyTorch BatchNorm2d default eps


# --------------------------------------------------------------------------- #
# Pallas kernel
# --------------------------------------------------------------------------- #
def unit_gcn_kernel(x_ref, m_ref, d_ref, o_ref):
    # x_ref : (RT, V*Cin)   rows = (n, t) pairs, lane-dense (256 lanes)
    # m_ref : (V*Cin, V*C)  fused (Linear * bn0) x (normalized A * bn) operator
    # d_ref : (1, V*C)      fused bias (Linear_bias/bn0 pushed through A, + bn shift)
    # o_ref : (RT, V*C)
    x = x_ref[...]
    acc = jnp.dot(x, m_ref[...], preferred_element_type=jnp.float32)
    # identity residual path (in_channels == out_channels): same (w, c) layout as x
    z = acc + d_ref[...] + x
    o_ref[...] = jnp.maximum(z, 0.0).astype(o_ref.dtype)


# --------------------------------------------------------------------------- #
# Grid sizing helpers
# --------------------------------------------------------------------------- #
def _dual_tensorcore_chip():
    """Best-effort detection of chips with 2 TensorCores sharing a grid."""
    try:
        kind = jax.devices()[0].device_kind.lower()
    except Exception:
        return False
    return any(tag in kind for tag in ("v7", "7x", "v4", "v5p"))


def _choose_row_tile(n_rows, dual_tc):
    """Rows-per-grid-step. Multiple of 8 (f32 sublane); collapse grid on 1-TC chips."""
    if n_rows % 8 != 0:
        return n_rows  # single full tile (full-extent block is always legal)
    divisors = [rt for rt in range(8, n_rows + 1, 8)
                if n_rows % rt == 0 and rt <= 1024]
    if dual_tc:
        multi = [rt for rt in divisors if n_rows // rt >= 2]
        if multi:
            return max(multi)          # biggest tile that still feeds both cores
    return max(divisors)               # biggest tile (grid -> 1 step when it fits)


# --------------------------------------------------------------------------- #
# Wrapper: parameter folding (grid-invariant) + pallas_call
# --------------------------------------------------------------------------- #
def unit_gcn_forward(x0_nctv, params):
    """x0_nctv: (N, C_in, T, V) float32, PyTorch NCHW convention."""
    N, Cin, T, V = x0_nctv.shape
    W = params["Linear_weight"]                                # (Cin, K*C)
    KC = W.shape[1]
    decA = params["DecoupleA"]                                 # (K, groups, V, V)
    K, groups = decA.shape[0], decA.shape[1]
    C = KC // K
    assert Cin == C, "identity residual path only"
    # TODO(synk): 1x1-conv + BN down-projection for in_channels != out_channels

    hp = jax.lax.Precision.HIGHEST

    # ---- bn0 + Linear_bias folded into the Linear weight (once, wrapper) ----
    s0 = params["bn0_gamma"] * jax.lax.rsqrt(params["bn0_var"] + BN_EPS)   # (KC,)
    W0 = W * s0[None, :]                                                    # (Cin, KC)
    c0 = (params["Linear_bias"].reshape(KC) - params["bn0_mean"]) * s0 \
        + params["bn0_beta"]                                                # (KC,)

    # ---- adjacency normalization (norm()) hoisted out of the kernel ----
    learn_A = jnp.tile(decA, (1, C // groups, 1, 1))                        # (K, C, V, V)
    dsum = jnp.sum(learn_A, axis=2, keepdims=True)                          # (K, C, 1, V)
    nA = learn_A / (dsum + 0.001)

    # ---- final bn folded in as per-channel scale / shift ----
    s = params["bn_gamma"] * jax.lax.rsqrt(params["bn_var"] + BN_EPS)       # (C,)
    shift = params["bn_beta"] - params["bn_mean"] * s                       # (C,)
    nA_s = nA * s[None, :, None, None]                                      # (K, C, V, V)

    # ---- combined operator: (Linear -> bn0 -> graph-agg -> bn) as one matmul ----
    W0_k = W0.reshape(Cin, K, C)
    # M[(v,cin),(w,c)] = sum_k W0[cin,k*C+c] * nA[k,c,v,w] * s[c]
    M = jnp.einsum("ikc,kcvw->viwc", W0_k, nA_s,
                   precision=hp).reshape(V * Cin, V * C)                    # (V*Cin, V*C)
    d = (jnp.einsum("kc,kcvw->wc", c0.reshape(K, C), nA_s, precision=hp)
         + shift[None, :]).reshape(1, V * C)                                # (1, V*C)

    # ---- lane-dense activation layout: (N*T, V*Cin) ----
    x_flat = jnp.transpose(x0_nctv, (0, 2, 3, 1)).reshape(N * T, V * Cin)

    R = N * T
    RT = _choose_row_tile(R, _dual_tensorcore_chip())
    grid = (pl.cdiv(R, RT),)

    out_flat = pl.pallas_call(
        unit_gcn_kernel,
        out_shape=jax.ShapeDtypeStruct((R, V * C), x_flat.dtype),
        grid_spec=pltpu.PrefetchScalarGridSpec(
            num_scalar_prefetch=0,
            grid=grid,
            in_specs=[
                pl.BlockSpec((RT, V * Cin), lambda r: (r, 0)),
                pl.BlockSpec((V * Cin, V * C), lambda r: (0, 0)),
                pl.BlockSpec((1, V * C), lambda r: (0, 0)),
            ],
            out_specs=pl.BlockSpec((RT, V * C), lambda r: (r, 0)),
        ),
        compiler_params=pltpu.CompilerParams(
            dimension_semantics=("parallel",)),
    )(x_flat, M, d)

    return jnp.transpose(out_flat.reshape(N, T, V, C), (0, 3, 1, 2))        # (N, C, T, V)


# --------------------------------------------------------------------------- #
# Parameter construction (module init) and pure-JAX reference
# --------------------------------------------------------------------------- #
def init_params(key, in_channels, out_channels, groups, num_point,
                num_subset=3, randomize_bn=False):
    assert in_channels == out_channels, "identity down path only"
    KC = out_channels * num_subset
    keys = jax.random.split(key, 10)
    # Synthetic non-negative adjacency A: (num_subset, V, V)
    A = jax.random.uniform(keys[0], (num_subset, num_point, num_point), jnp.float32)
    decoupleA = jnp.tile(A.reshape(num_subset, 1, num_point, num_point),
                         (1, groups, 1, 1))                                 # (3, groups, V, V)
    lin_w = jax.random.normal(keys[1], (in_channels, KC), jnp.float32) \
        * math.sqrt(0.5 / KC)
    if randomize_bn:
        # Non-trivial BN stats / O(1) gammas so the graph-conv branch actually
        # contributes to the output (module default bn gamma=1e-6 ~ zeroes it).
        extra = dict(
            Linear_bias=0.1 * jax.random.normal(keys[2], (1, KC, 1, 1), jnp.float32),
            bn0_gamma=1.0 + 0.2 * jax.random.normal(keys[3], (KC,), jnp.float32),
            bn0_beta=0.1 * jax.random.normal(keys[4], (KC,), jnp.float32),
            bn0_mean=0.1 * jax.random.normal(keys[5], (KC,), jnp.float32),
            bn0_var=jax.random.uniform(keys[6], (KC,), jnp.float32, 0.5, 1.5),
            bn_gamma=1.0 + 0.2 * jax.random.normal(keys[7], (out_channels,), jnp.float32),
            bn_beta=0.1 * jax.random.normal(keys[8], (out_channels,), jnp.float32),
            bn_mean=0.1 * jax.random.normal(keys[9], (out_channels,), jnp.float32),
            bn_var=jnp.full((out_channels,), 0.9, jnp.float32),
        )
    else:
        # Freshly-initialized module: bn0 gamma=1, bn gamma=1e-6, bias=1e-6.
        extra = dict(
            Linear_bias=jnp.full((1, KC, 1, 1), 1e-6, jnp.float32),
            bn0_gamma=jnp.ones((KC,), jnp.float32),
            bn0_beta=jnp.zeros((KC,), jnp.float32),
            bn0_mean=jnp.zeros((KC,), jnp.float32),
            bn0_var=jnp.ones((KC,), jnp.float32),
            bn_gamma=jnp.full((out_channels,), 1e-6, jnp.float32),
            bn_beta=jnp.zeros((out_channels,), jnp.float32),
            bn_mean=jnp.zeros((out_channels,), jnp.float32),
            bn_var=jnp.ones((out_channels,), jnp.float32),
        )
    return dict(DecoupleA=decoupleA, Linear_weight=lin_w, **extra)


def unit_gcn_reference(x0, params):
    """Pure-JAX mirror of the PyTorch forward (NCTV, eval-mode BN)."""
    N, Cin, T, V = x0.shape
    W = params["Linear_weight"]
    KC = W.shape[1]
    decA = params["DecoupleA"]
    K, groups = decA.shape[0], decA.shape[1]
    C = KC // K
    hp = jax.lax.Precision.HIGHEST

    learn_A = jnp.tile(decA, (1, C // groups, 1, 1))                        # (K, C, V, V)
    dsum = jnp.sum(learn_A, axis=2, keepdims=True)                          # (K, C, 1, V)
    nA = learn_A / (dsum + 0.001)

    def bn(x, g, b, m, v):
        g, b, m, v = (a.reshape(1, -1, 1, 1) for a in (g, b, m, v))
        return (x - m) * (g * jax.lax.rsqrt(v + BN_EPS)) + b

    x = jnp.einsum("nctw,cd->ndtw", x0, W, precision=hp) + params["Linear_bias"]
    x = bn(x, params["bn0_gamma"], params["bn0_beta"],
           params["bn0_mean"], params["bn0_var"])
    x = x.reshape(N, K, C, T, V)
    x = jnp.einsum("nkctv,kcvw->nctw", x, nA, precision=hp)
    x = bn(x, params["bn_gamma"], params["bn_beta"],
           params["bn_mean"], params["bn_var"])
    x = x + x0
    return jnp.maximum(x, 0.0)


# --------------------------------------------------------------------------- #
# Self-test
# --------------------------------------------------------------------------- #
if __name__ == "__main__":
    # Small shapes consistent with the module: num_point=16, T=8,
    # in_channels == out_channels == 16, groups=4, num_subset=3.
    N, C, T, V = 2, 16, 8, 16
    groups = 4

    key = jax.random.PRNGKey(0)
    k_params, k_x = jax.random.split(key)
    x0 = jax.random.normal(k_x, (N, C, T, V), jnp.float32)

    # (1) module-default init (bn gamma = 1e-6) and
    # (2) randomized O(1) BN stats so the graph-conv / folding path is exercised.
    for randomize in (False, True):
        params = init_params(k_params, C, C, groups, V, randomize_bn=randomize)
        out = jax.block_until_ready(unit_gcn_forward(x0, params))
        ref = jax.block_until_ready(unit_gcn_reference(x0, params))
        assert out.shape == (N, C, T, V) and out.dtype == jnp.float32
        if not bool(jnp.allclose(out, ref, atol=3e-4, rtol=3e-4)):
            err = float(jnp.max(jnp.abs(out - ref)))
            raise AssertionError(
                f"Pallas kernel mismatch vs JAX reference "
                f"(randomize_bn={randomize}, max abs err={err:.3e})")

    print("KERNEL_OK")
</pallas_src>

<mosaic_0001>
module attributes {stable_mosaic.version = 11 : i64} {
  func.func @unit_gcn_kernel(%arg0: i32, %arg1: memref<16x256xf32, #tpu.memory_space<vmem>>, %arg2: memref<256x256xf32, #tpu.memory_space<vmem>>, %arg3: memref<1x256xf32, #tpu.memory_space<vmem>>, %arg4: memref<16x256xf32, #tpu.memory_space<vmem>>) attributes {dimension_semantics = [#tpu.dimension_semantics<parallel>], iteration_bounds = array<i64: 1>, scalar_prefetch = 0 : i64, scratch_operands = 0 : i64, tpu.core_type = #tpu.core_type<tc>, window_params = [{transform_indices = @transform_0, window_bounds = array<i64: 16, 256>}, {pipeline_mode = #tpu.pipeline_mode<synchronous>, transform_indices = @transform_1, window_bounds = array<i64: 256, 256>}, {pipeline_mode = #tpu.pipeline_mode<synchronous>, transform_indices = @transform_2, window_bounds = array<i64: 1, 256>}, {transform_indices = @transform_3, window_bounds = array<i64: 16, 256>}]} {
    %c0 = arith.constant 0 : index
    %c0_0 = arith.constant 0 : index
    %0 = vector.load %arg1[%c0, %c0_0] : memref<16x256xf32, #tpu.memory_space<vmem>>, vector<16x256xf32>
    %c0_1 = arith.constant 0 : index
    %c0_2 = arith.constant 0 : index
    %1 = vector.load %arg2[%c0_1, %c0_2] : memref<256x256xf32, #tpu.memory_space<vmem>>, vector<256x256xf32>
    %cst = arith.constant dense<0.000000e+00> : vector<16x256xf32>
    %2 = tpu.matmul %0, %1, %cst {dimension_numbers = #tpu.dot_dimension_numbers<[1], [0], [0], [1], [0, 0, 1, 1], [], []>} : vector<16x256xf32>, vector<256x256xf32>, vector<16x256xf32> -> vector<16x256xf32>
    %c0_3 = arith.constant 0 : index
    %c0_4 = arith.constant 0 : index
    %3 = vector.load %arg3[%c0_3, %c0_4] : memref<1x256xf32, #tpu.memory_space<vmem>>, vector<1x256xf32>
    %4 = vector.broadcast %3 : vector<1x256xf32> to vector<16x256xf32>
    %5 = arith.addf %2, %4 : vector<16x256xf32>
    %6 = arith.addf %5, %0 : vector<16x256xf32>
    %cst_5 = arith.constant 0.000000e+00 : f32
    %7 = vector.broadcast %cst_5 : f32 to vector<16x256xf32>
    %8 = arith.maximumf %6, %7 : vector<16x256xf32>
    %c0_6 = arith.constant 0 : index
    %c0_7 = arith.constant 0 : index
    %9 = vector.load %arg4[%c0_6, %c0_7] : memref<16x256xf32, #tpu.memory_space<vmem>>, vector<16x256xf32>
    tpu.vector_store %arg4[%c0_6, %c0_7], %8 {strides = array<i32>} : memref<16x256xf32, #tpu.memory_space<vmem>>, vector<16x256xf32>,
    return
  }
  func.func @transform_0(%arg0: i32) -> (i32, i32) {
    %c0_i32 = arith.constant 0 : i32
    %c0_i32_0 = arith.constant 0 : i32
    return %arg0, %c0_i32 : i32, i32
  }
  func.func @transform_1(%arg0: i32) -> (i32, i32) {
    %c0_i32 = arith.constant 0 : i32
    %c0_i32_0 = arith.constant 0 : i32
    %c0_i32_1 = arith.constant 0 : i32
    return %c0_i32, %c0_i32_0 : i32, i32
  }
  func.func @transform_2(%arg0: i32) -> (i32, i32) {
    %c0_i32 = arith.constant 0 : i32
    %c0_i32_0 = arith.constant 0 : i32
    %c0_i32_1 = arith.constant 0 : i32
    return %c0_i32, %c0_i32_0 : i32, i32
  }
  func.func @transform_3(%arg0: i32) -> (i32, i32) {
    %c0_i32 = arith.constant 0 : i32
    %c0_i32_0 = arith.constant 0 : i32
    return %arg0, %c0_i32 : i32, i32
  }
}

</mosaic_0001>

<llo_original>
// kernel: tpu_custom_call.1
$region0: #{tpu_custom_call.1}
  #allocation0 [shape = 'u32[]', space=smem, size = 0x4, offset = 0x4, fixed_abs, tag = 'smem constant byte address 0x4 - core index']
  #allocation1 [shape = 'u32[72,128]{1,0:T(1,128)}', space=vmem, size = 0x9000, scoped, tag = 'internal scratch']
  %s0 = inlined_call_operand.hbm [shape: f32[16,256], index: 0, kind: input, shape index: {}]
  %s1 = inlined_call_operand.hbm [shape: f32[256,256], index: 1, kind: input, shape index: {}]
  %s2 = inlined_call_operand.hbm [shape: f32[1,256], index: 2, kind: input, shape index: {}]
  %s3 = inlined_call_operand.hbm [shape: f32[16,256], index: 3, kind: output, shape index: {}]
  %s4 = sld [smem:[#allocation0]]
  $region34: #{tpu_custom_call.1} parent=0
    _
  %s6 = ssub.s32 1, %s4
  %s7 = scalar_select 0, %s6, %s4
  $region1: #{tpu_custom_call.1} parent=0
    #allocation2 [shape = 'u8[16384]{0}', space=vmem, size = 0x4000, scoped, tag = 'input window, operand 0, single buffered']
    #allocation3 [shape = 's32[1]{0}', space=sflag, size = 0x4, scoped, tag = 'scoped memory for tpu_custom_call.1']
    #allocation4 [shape = 's32[1]{0}', space=sflag, size = 0x4, scoped, tag = 'scoped memory for tpu_custom_call.1']
    #allocation5 [shape = 'u8[262144]{0}', space=vmem, size = 0x40000, scoped, tag = 'input window, operand 1, single buffered']
    #allocation6 [shape = 's32[1]{0}', space=sflag, size = 0x4, scoped, tag = 'scoped memory for tpu_custom_call.1']
    #allocation7 [shape = 'u8[1024]{0}', space=vmem, size = 0x400, scoped, tag = 'input window, operand 2, single buffered']
    #allocation8 [shape = 'u8[16384]{0}', space=vmem, size = 0x4000, scoped, tag = 'output window, operand 0, single buffered']
    %8 = vsyncpa [#allocation3], 0
    %9 = vsyncpa [#allocation6], 0
    %10 = vsyncpa [#allocation4], 0
    // Predicated region
    $region2: #{tpu_custom_call.1} parent=1 // pred_check
      _
    $region3: #{tpu_custom_call.1} parent=1 // pred_check_branch
      %12 = sbr.rel (0) target = $region5
    $region4: #{tpu_custom_call.1} parent=1 // pred_region
      %14 = vsyncadd [#allocation3], 0
      %s15 = sshll.u32 %s0, 4
      %s16 = int_to_ptr.hbm [resolvable:$true] %s15
      %s17 = sshll.u32 [#allocation2], 4
      %s18 = int_to_ptr.vmem [resolvable:$true] %s17
      %23 = dma.hbm_to_vmem [thread:$0]  %s16, 512, %s18, [#allocation3], 256, 256, 16
    $region5: #{tpu_custom_call.1} parent=1 // pred_fallthru
      _
    // Predicated region
    $region6: #{tpu_custom_call.1} parent=1 // pred_check
      _
    $region7: #{tpu_custom_call.1} parent=1 // pred_check_branch
      %25 = sbr.rel (0) target = $region9
    $region8: #{tpu_custom_call.1} parent=1 // pred_region
      %27 = vsyncadd [#allocation6], 0
      %s28 = sshll.u32 %s1, 4
      %s29 = int_to_ptr.hbm [resolvable:$true] %s28
      %s30 = sshll.u32 [#allocation5], 4
      %s31 = int_to_ptr.vmem [resolvable:$true] %s30
      %36 = dma.hbm_to_vmem [thread:$0]  %s29, 8192, %s31, [#allocation6], 256, 256, 16
    $region9: #{tpu_custom_call.1} parent=1 // pred_fallthru
      _
    // Predicated region
    $region10: #{tpu_custom_call.1} parent=1 // pred_check
      _
    $region11: #{tpu_custom_call.1} parent=1 // pred_check_branch
      %38 = sbr.rel (0) target = $region13
    $region12: #{tpu_custom_call.1} parent=1 // pred_region
      %40 = vsyncadd [#allocation6], 0
      %s42 = sshll.u32 %s2, 4
      %s43 = int_to_ptr.hbm [resolvable:$true] %s42
      %s44 = sshll.u32 [#allocation7], 4
      %s45 = int_to_ptr.vmem [resolvable:$true] %s44
      %47 = dma.hbm_to_vmem [thread:$0]  %s43, 32, %s45, [#allocation6]
    $region13: #{tpu_custom_call.1} parent=1 // pred_fallthru
      _
    // Predicated region
    $region14: #{tpu_custom_call.1} parent=1 // pred_check
      _
    $region15: #{tpu_custom_call.1} parent=1 // pred_check_branch
      %49 = sbr.rel (0) target = $region17
    $region16: #{tpu_custom_call.1} parent=1 // pred_region
      %51 = dma.done [#allocation3], 512
    $region17: #{tpu_custom_call.1} parent=1 // pred_fallthru
      _
    // Predicated region
    $region18: #{tpu_custom_call.1} parent=1 // pred_check
      _
    $region19: #{tpu_custom_call.1} parent=1 // pred_check_branch
      %53 = sbr.rel (0) target = $region21
    $region20: #{tpu_custom_call.1} parent=1 // pred_region
      %55 = dma.done [#allocation6], 8192
    $region21: #{tpu_custom_call.1} parent=1 // pred_fallthru
      _
    // Predicated region
    $region22: #{tpu_custom_call.1} parent=1 // pred_check
      _
    $region23: #{tpu_custom_call.1} parent=1 // pred_check_branch
      %57 = sbr.rel (0) target = $region25
    $region24: #{tpu_custom_call.1} parent=1 // pred_region
      %59 = dma.done [#allocation6], 32
    $region25: #{tpu_custom_call.1} parent=1 // pred_fallthru
      _
    %v60 = vld [vmem:[#allocation2] sm:$0xff]
    %v61 = vld [vmem:[#allocation2 + $0x8] sm:$0xff]
    %v62 = vld [vmem:[#allocation2 + $0x10] sm:$0xff]
    %v63 = vld [vmem:[#allocation2 + $0x18] sm:$0xff]
    %v64 = vld [vmem:[#allocation5] sm:$0xff]
    %v65 = vld [vmem:[#allocation5 + $0x8] sm:$0xff]
    %v66 = vld [vmem:[#allocation5 + $0x10] sm:$0xff]
    %v67 = vld [vmem:[#allocation5 + $0x18] sm:$0xff]
    %v68 = vld [vmem:[#allocation5 + $0x20] sm:$0xff]
    %v69 = vld [vmem:[#allocation5 + $0x28] sm:$0xff]
    %v70 = vld [vmem:[#allocation5 + $0x30] sm:$0xff]
    %v71 = vld [vmem:[#allocation5 + $0x38] sm:$0xff]
    %v72 = vld [vmem:[#allocation5 + $0x40] sm:$0xff]
    %v73 = vld [vmem:[#allocation5 + $0x48] sm:$0xff]
    %v74 = vld [vmem:[#allocation5 + $0x50] sm:$0xff]
    %v75 = vld [vmem:[#allocation5 + $0x58] sm:$0xff]
    %v76 = vld [vmem:[#allocation5 + $0x60] sm:$0xff]
    %v77 = vld [vmem:[#allocation5 + $0x68] sm:$0xff]
    %v78 = vld [vmem:[#allocation5 + $0x70] sm:$0xff]
    %v79 = vld [vmem:[#allocation5 + $0x78] sm:$0xff]
    %v80 = vld [vmem:[#allocation5 + $0x80] sm:$0xff]
    %v81 = vld [vmem:[#allocation5 + $0x88] sm:$0xff]
    %v82 = vld [vmem:[#allocation5 + $0x90] sm:$0xff]
    %v83 = vld [vmem:[#allocation5 + $0x98] sm:$0xff]
    %v84 = vld [vmem:[#allocation5 + $0xa0] sm:$0xff]
    %v85 = vld [vmem:[#allocation5 + $0xa8] sm:$0xff]
    %v86 = vld [vmem:[#allocation5 + $0xb0] sm:$0xff]
    %v87 = vld [vmem:[#allocation5 + $0xb8] sm:$0xff]
    %v88 = vld [vmem:[#allocation5 + $0xc0] sm:$0xff]
    %v89 = vld [vmem:[#allocation5 + $0xc8] sm:$0xff]
    %v90 = vld [vmem:[#allocation5 + $0xd0] sm:$0xff]
    %v91 = vld [vmem:[#allocation5 + $0xd8] sm:$0xff]
    %v92 = vld [vmem:[#allocation5 + $0xe0] sm:$0xff]
    %v93 = vld [vmem:[#allocation5 + $0xe8] sm:$0xff]
    %v94 = vld [vmem:[#allocation5 + $0xf0] sm:$0xff]
    %v95 = vld [vmem:[#allocation5 + $0xf8] sm:$0xff]
    %v96 = vld [vmem:[#allocation5 + $0x100] sm:$0xff]
    %v97 = vld [vmem:[#allocation5 + $0x108] sm:$0xff]
    %v98 = vld [vmem:[#allocation5 + $0x110] sm:$0xff]
    %v99 = vld [vmem:[#allocation5 + $0x118] sm:$0xff]
    %v100 = vld [vmem:[#allocation5 + $0x120] sm:$0xff]
    %v101 = vld [vmem:[#allocation5 + $0x128] sm:$0xff]
    %v102 = vld [vmem:[#allocation5 + $0x130] sm:$0xff]
    %v103 = vld [vmem:[#allocation5 + $0x138] sm:$0xff]
    %v104 = vld [vmem:[#allocation5 + $0x140] sm:$0xff]
    %v105 = vld [vmem:[#allocation5 + $0x148] sm:$0xff]
    %v106 = vld [vmem:[#allocation5 + $0x150] sm:$0xff]
    %v107 = vld [vmem:[#allocation5 + $0x158] sm:$0xff]
    %v108 = vld [vmem:[#allocation5 + $0x160] sm:$0xff]
    %v109 = vld [vmem:[#allocation5 + $0x168] sm:$0xff]
    %v110 = vld [vmem:[#allocation5 + $0x170] sm:$0xff]
    %v111 = vld [vmem:[#allocation5 + $0x178] sm:$0xff]
    %v112 = vld [vmem:[#allocation5 + $0x180] sm:$0xff]
    %v113 = vld [vmem:[#allocation5 + $0x188] sm:$0xff]
    %v114 = vld [vmem:[#allocation5 + $0x190] sm:$0xff]
    %v115 = vld [vmem:[#allocation5 + $0x198] sm:$0xff]
    %v116 = vld [vmem:[#allocation5 + $0x1a0] sm:$0xff]
    %v117 = vld [vmem:[#allocation5 + $0x1a8] sm:$0xff]
    %v118 = vld [vmem:[#allocation5 + $0x1b0] sm:$0xff]
    %v119 = vld [vmem:[#allocation5 + $0x1b8] sm:$0xff]
    %v120 = vld [vmem:[#allocation5 + $0x1c0] sm:$0xff]
    %v121 = vld [vmem:[#allocation5 + $0x1c8] sm:$0xff]
    %v122 = vld [vmem:[#allocation5 + $0x1d0] sm:$0xff]
    %v123 = vld [vmem:[#allocation5 + $0x1d8] sm:$0xff]
    %v124 = vld [vmem:[#allocation5 + $0x1e0] sm:$0xff]
    %v125 = vld [vmem:[#allocation5 + $0x1e8] sm:$0xff]
    %v126 = vld [vmem:[#allocation5 + $0x1f0] sm:$0xff]
    %v127 = vld [vmem:[#allocation5 + $0x1f8] sm:$0xff]
    %v128 = vld [vmem:[#allocation7] sm:$0x3]
    %v130 = vperm.slane %v128, 0
    %v131 = vperm.slane %v128, 1
    %134 = vmatpush.msra.mxu0 %v94
    %135 = vmatpush.msra.mxu0 %v92
    %136 = vmatpush.msra.mxu0 %v90
    %137 = vmatpush.msra.mxu0 %v88
    %138 = vmatpush.msra.mxu0 %v86
    %139 = vmatpush.msra.mxu0 %v84
    %140 = vmatpush.msra.mxu0 %v82
    %141 = vmatpush.msra.mxu0 %v80
    %142 = vmatpush.msra.mxu0 %v78
    %143 = vmatpush.msra.mxu0 %v76
    %144 = vmatpush.msra.mxu0 %v74
    %145 = vmatpush.msra.mxu0 %v72
    %146 = vmatpush.msra.mxu0 %v70
    %147 = vmatpush.msra.mxu0 %v68
    %148 = vmatpush.msra.mxu0 %v66
    %149 = vmatpush.msra.mxu0 %v64
    %150 = vmatmul.f32.gmra.mxu0 %v60
    %v151 = vpop.f32.mrf.mxu0
    %v152 = vadd.f32 %v130, %v151
    %153 = vmatmul.f32.gmra.mxu0 %v62
    %v154 = vpop.f32.mrf.mxu0
    %v155 = vadd.f32 %v130, %v154
    %156 = vdwg.mxu0
    %157 = vmatpush.msra.mxu0 %v126
    %158 = vmatpush.msra.mxu0 %v124
    %159 = vmatpush.msra.mxu0 %v122
    %160 = vmatpush.msra.mxu0 %v120
    %161 = vmatpush.msra.mxu0 %v118
    %162 = vmatpush.msra.mxu0 %v116
    %163 = vmatpush.msra.mxu0 %v114
    %164 = vmatpush.msra.mxu0 %v112
    %165 = vmatpush.msra.mxu0 %v110
    %166 = vmatpush.msra.mxu0 %v108
    %167 = vmatpush.msra.mxu0 %v106
    %168 = vmatpush.msra.mxu0 %v104
    %169 = vmatpush.msra.mxu0 %v102
    %170 = vmatpush.msra.mxu0 %v100
    %171 = vmatpush.msra.mxu0 %v98
    %172 = vmatpush.msra.mxu0 %v96
    %173 = vmatmul.f32.gmra.mxu0 %v61
    %v174 = vpop.f32.mrf.mxu0
    %v175 = vadd.f32 %v152, %v174
    %176 = vmatmul.f32.gmra.mxu0 %v63
    %v177 = vpop.f32.mrf.mxu0
    %v178 = vadd.f32 %v155, %v177
    %179 = vdwg.mxu0
    %180 = vmatpush.msra.mxu0 %v95
    %181 = vmatpush.msra.mxu0 %v93
    %182 = vmatpush.msra.mxu0 %v91
    %183 = vmatpush.msra.mxu0 %v89
    %184 = vmatpush.msra.mxu0 %v87
    %185 = vmatpush.msra.mxu0 %v85
    %186 = vmatpush.msra.mxu0 %v83
    %187 = vmatpush.msra.mxu0 %v81
    %188 = vmatpush.msra.mxu0 %v79
    %189 = vmatpush.msra.mxu0 %v77
    %190 = vmatpush.msra.mxu0 %v75
    %191 = vmatpush.msra.mxu0 %v73
    %192 = vmatpush.msra.mxu0 %v71
    %193 = vmatpush.msra.mxu0 %v69
    %194 = vmatpush.msra.mxu0 %v67
    %195 = vmatpush.msra.mxu0 %v65
    %196 = vmatmul.f32.gmra.mxu0 %v60
    %v197 = vpop.f32.mrf.mxu0
    %v198 = vadd.f32 %v131, %v197
    %199 = vmatmul.f32.gmra.mxu0 %v62
    %v200 = vpop.f32.mrf.mxu0
    %v201 = vadd.f32 %v131, %v200
    %202 = vdwg.mxu0
    %203 = vmatpush.msra.mxu0 %v127
    %204 = vmatpush.msra.mxu0 %v125
    %205 = vmatpush.msra.mxu0 %v123
    %206 = vmatpush.msra.mxu0 %v121
    %207 = vmatpush.msra.mxu0 %v119
    %208 = vmatpush.msra.mxu0 %v117
    %209 = vmatpush.msra.mxu0 %v115
    %210 = vmatpush.msra.mxu0 %v113
    %211 = vmatpush.msra.mxu0 %v111
    %212 = vmatpush.msra.mxu0 %v109
    %213 = vmatpush.msra.mxu0 %v107
    %214 = vmatpush.msra.mxu0 %v105
    %215 = vmatpush.msra.mxu0 %v103
    %216 = vmatpush.msra.mxu0 %v101
    %217 = vmatpush.msra.mxu0 %v99
    %218 = vmatpush.msra.mxu0 %v97
    %219 = vmatmul.f32.gmra.mxu0 %v61
    %v220 = vpop.f32.mrf.mxu0
    %v221 = vadd.f32 %v198, %v220
    %222 = vmatmul.f32.gmra.mxu0 %v63
    %v223 = vpop.f32.mrf.mxu0
    %v224 = vadd.f32 %v201, %v223
    %225 = vdwg.mxu0
    %v226 = vadd.f32 %v175, %v60
    %v227 = vadd.f32 %v221, %v61
    %v228 = vadd.f32 %v178, %v62
    %v229 = vadd.f32 %v224, %v63
    %v230 = vmax.f32 %v226, 0.0
    %v231 = vmax.f32 %v227, 0.0
    %v232 = vmax.f32 %v228, 0.0
    %v233 = vmax.f32 %v229, 0.0
    %234 = vst [vmem:[#allocation8] sm:$0xff] %v230
    %235 = vst [vmem:[#allocation8 + $0x8] sm:$0xff] %v231
    %236 = vst [vmem:[#allocation8 + $0x10] sm:$0xff] %v232
    %237 = vst [vmem:[#allocation8 + $0x18] sm:$0xff] %v233
    // Predicated region
    $region26: #{tpu_custom_call.1} parent=1 // pred_check
      _
    $region27: #{tpu_custom_call.1} parent=1 // pred_check_branch
      %239 = sbr.rel (0) target = $region29
    $region28: #{tpu_custom_call.1} parent=1 // pred_region
      %241 = vsyncadd [#allocation4], 0
      %s242 = sshll.u32 [#allocation8], 4
      %s243 = int_to_ptr.vmem [resolvable:$true] %s242
      %s244 = sshll.u32 %s3, 4
      %s245 = int_to_ptr.hbm [resolvable:$true] %s244
      %250 = dma.vmem_to_hbm [thread:$0]  %s243, 512, %s245, [#allocation4], 256, 256, 16
    $region29: #{tpu_custom_call.1} parent=1 // pred_fallthru
      _
    // Predicated region
    $region30: #{tpu_custom_call.1} parent=1 // pred_check
      _
    $region31: #{tpu_custom_call.1} parent=1 // pred_check_branch
      %252 = sbr.rel (0) target = $region33
    $region32: #{tpu_custom_call.1} parent=1 // pred_region
      %254 = dma.done [#allocation4], 512
    $region33: #{tpu_custom_call.1} parent=1 // pred_fallthru
      _
    %255 = vsyncpa [#allocation3], 1
    %256 = vsyncpa [#allocation6], 1
    %257 = vsyncpa [#allocation4], 1

</llo_original>
